<compile_context>
chip_gen: v5e
topology: v5e:2x2
jax: 0.10.0
libtpu: 0.0.40
codegen_flags: <defaults>
</compile_context>

<pallas_src>
import functools

import jax
import jax.numpy as jnp
from jax import lax
from jax.experimental import pallas as pl
from jax.experimental.pallas import tpu as pltpu

NEG_SLOPE = 0.01  # PyTorch nn.LeakyReLU default negative_slope


def _leaky_relu(v):
    return jnp.where(v > 0, v, NEG_SLOPE * v)


def _res_unit_kernel(x_ref, w1_ref, b1_ref, w2_ref, b2_ref, mask_ref, o_ref,
                     *, W, K):
    """One grid step = B images, channel-major / lane-dense layout.

    x_ref   : (Cin,  L)            L = B*H*W lanes (B images concatenated)
    w1_ref  : (Cmid, Cin)          1x1 conv weight
    b1_ref  : (Cmid, 1)            1x1 conv bias
    w2_ref  : (Cout, K*K*Cmid)     fused KxK conv weight (tap-major columns)
    b2_ref  : (Cout, 1)            KxK conv bias
    mask_ref: (K*K*Cmid, L)        pre-expanded zero-padding validity masks
    o_ref   : (Cout, L)            output
    """
    x = x_ref[...]                               # (Cin, L)
    L = x.shape[1]

    # ---- CNL_1: 1x1 conv == channel matmul over the lane-dense axis ----
    y1 = _leaky_relu(
        jnp.dot(w1_ref[...], x, preferred_element_type=jnp.float32)
        + b1_ref[...])                           # (Cmid, L)

    # ---- im2col slab as a value: K*K lane-rolled copies of y1, masked ----
    pad = (K - 1) // 2
    taps = []
    for kh in range(K):
        for kw in range(K):
            off = (kh - pad) * W + (kw - pad)    # flattened spatial shift
            if off == 0:
                taps.append(y1)
            else:
                # rolled[:, i] = y1[:, (i + off) mod L]; any tap that crosses an
                # image border (incl. cross-image wrap) is zeroed by the mask.
                taps.append(pltpu.roll(y1, shift=(-off) % L, axis=1))
    slab = jnp.concatenate(taps, axis=0) * mask_ref[...]   # (K*K*Cmid, L)

    # ---- CNL_2: KxK 'same' conv as ONE fused matmul (contraction K*K*Cmid) --
    y2 = _leaky_relu(
        jnp.dot(w2_ref[...], slab, preferred_element_type=jnp.float32)
        + b2_ref[...])                           # (Cout, L)

    # ---- residual add (Cout == Cin) ----
    o_ref[...] = (y2 + x).astype(o_ref.dtype)


def res_unit_pallas(x_nchw, w1_oi, b1, w2_oikk, b2, *, K):
    """x_nchw: (N, Cin, H, W) f32.  w1_oi: (Cmid, Cin).  w2_oikk: (Cout, Cmid, K, K).
    b1: (Cmid,), b2: (Cout,).  Returns (N, Cout, H, W)."""
    N, Cin, H, W = x_nchw.shape
    Cmid, Cin_w = w1_oi.shape
    Cout = w2_oikk.shape[0]
    HW = H * W
    KK = K * K

    if Cout != Cin:
        raise ValueError("ResUnit residual add requires Cout == Cin "
                         f"(got Cout={Cout}, Cin={Cin}).")
    if Cin_w != Cin or w2_oikk.shape[1] != Cmid:
        raise ValueError("weight/channel shape mismatch")
    if K % 2 != 1:
        raise ValueError("only odd kernel_size supported for 'same' padding")

    # Grid: 2 parallel steps when N is even (one per v7x TensorCore; on
    # v5e/v6e the extra step costs ~0.35us), otherwise 1 fat step with B=N.
    steps = 2 if (N >= 2 and N % 2 == 0) else 1
    B = N // steps
    L = B * HW

    # Layout plumbing (host/XLA side, tiny): NCHW -> channel-major (C, N*HW).
    x_cl = jnp.transpose(x_nchw, (1, 0, 2, 3)).reshape(Cin, N * HW)

    # Host-side weight prep: fused conv2 weight, column = (kh*K + kw)*Cmid + cm.
    w2f = jnp.transpose(w2_oikk, (0, 2, 3, 1)).reshape(Cout, KK * Cmid)
    b1c = b1.reshape(Cmid, 1)
    b2c = b2.reshape(Cout, 1)

    # Pre-expanded border-validity masks: (K*K*Cmid, L), tap-major rows,
    # tiled across the B images sharing the lane axis.
    pad = (K - 1) // 2
    hh = jnp.arange(H)[:, None]
    ww = jnp.arange(W)[None, :]
    mask_rows = []
    for kh in range(K):
        for kw in range(K):
            dh, dw = kh - pad, kw - pad
            valid = ((hh + dh >= 0) & (hh + dh < H)
                     & (ww + dw >= 0) & (ww + dw < W))
            mask_rows.append(valid.reshape(HW))
    masks = jnp.stack(mask_rows, axis=0).astype(x_cl.dtype)      # (KK, HW)
    masks = jnp.tile(masks, (1, B))                              # (KK, L)
    masks = jnp.repeat(masks, Cmid, axis=0)                      # (KK*Cmid, L)

    # Advisory cost estimate (kernel is tiny / latency-bound).
    flops = 2 * N * HW * (Cmid * Cin + Cout * KK * Cmid)
    bytes_accessed = 4 * (x_cl.size + Cout * N * HW + w1_oi.size + w2f.size
                          + b1c.size + b2c.size + masks.size)
    cost = pl.CostEstimate(flops=flops, transcendentals=0,
                           bytes_accessed=bytes_accessed)

    kern = functools.partial(_res_unit_kernel, W=W, K=K)
    out_cl = pl.pallas_call(
        kern,
        out_shape=jax.ShapeDtypeStruct((Cout, N * HW), x_cl.dtype),
        grid=(steps,),
        in_specs=[
            pl.BlockSpec((Cin, L), lambda s: (0, s)),
            pl.BlockSpec((Cmid, Cin), lambda s: (0, 0)),
            pl.BlockSpec((Cmid, 1), lambda s: (0, 0)),
            pl.BlockSpec((Cout, KK * Cmid), lambda s: (0, 0)),
            pl.BlockSpec((Cout, 1), lambda s: (0, 0)),
            pl.BlockSpec((KK * Cmid, L), lambda s: (0, 0)),
        ],
        out_specs=pl.BlockSpec((Cout, L), lambda s: (0, s)),
        compiler_params=pltpu.CompilerParams(
            dimension_semantics=("parallel",)),
        cost_estimate=cost,
    )(x_cl, w1_oi, b1c, w2f, b2c, masks)

    # (Cout, N*HW) -> (N, Cout, H, W)
    return jnp.transpose(out_cl.reshape(Cout, N, H, W), (1, 0, 2, 3))


def res_unit_reference(x_nchw, w1_oi, b1, w2_oikk, b2, *, K):
    """Pure-JAX reference (lax.conv) matching PyTorch ResUnit semantics."""
    Cmid, Cin = w1_oi.shape
    Cout = w2_oikk.shape[0]
    y1 = lax.conv_general_dilated(
        x_nchw, w1_oi.reshape(Cmid, Cin, 1, 1), (1, 1), 'SAME',
        dimension_numbers=('NCHW', 'OIHW', 'NCHW'))
    y1 = _leaky_relu(y1 + b1.reshape(1, Cmid, 1, 1))
    y2 = lax.conv_general_dilated(
        y1, w2_oikk, (1, 1), 'SAME',
        dimension_numbers=('NCHW', 'OIHW', 'NCHW'))
    y2 = _leaky_relu(y2 + b2.reshape(1, Cout, 1, 1))
    return y2 + x_nchw


if __name__ == "__main__":
    # ResUnit(in_channels=4, mid_channels=8, out_channels=4, kernel_size=3)
    N, Cin, Cmid, Cout, H, W, K = 2, 4, 8, 4, 16, 16, 3

    key = jax.random.PRNGKey(0)
    k_x, k_w1, k_b1, k_w2, k_b2 = jax.random.split(key, 5)

    x = jax.random.normal(k_x, (N, Cin, H, W), dtype=jnp.float32)
    # Parameters in PyTorch-like layouts:
    #   conv1 weight (Cmid, Cin)  [== (Cmid, Cin, 1, 1) squeezed], bias (Cmid,)
    #   conv2 weight (Cout, Cmid, K, K),                            bias (Cout,)
    w1 = 0.2 * jax.random.normal(k_w1, (Cmid, Cin), dtype=jnp.float32)
    b1 = 0.1 * jax.random.normal(k_b1, (Cmid,), dtype=jnp.float32)
    w2 = 0.2 * jax.random.normal(k_w2, (Cout, Cmid, K, K), dtype=jnp.float32)
    b2 = 0.1 * jax.random.normal(k_b2, (Cout,), dtype=jnp.float32)

    out = res_unit_pallas(x, w1, b1, w2, b2, K=K)
    out = jax.block_until_ready(out)

    ref = res_unit_reference(x, w1, b1, w2, b2, K=K)
    assert out.shape == (N, Cout, H, W)
    assert jnp.allclose(out, ref, atol=1e-3, rtol=1e-3), (
        float(jnp.max(jnp.abs(out - ref))))

    print("KERNEL_OK")
</pallas_src>

<mosaic_0001>
module attributes {stable_mosaic.version = 11 : i64} {
  func.func @_res_unit_kernel(%arg0: i32, %arg1: memref<4x256xf32, #tpu.memory_space<vmem>>, %arg2: memref<8x4xf32, #tpu.memory_space<vmem>>, %arg3: memref<8x1xf32, #tpu.memory_space<vmem>>, %arg4: memref<4x72xf32, #tpu.memory_space<vmem>>, %arg5: memref<4x1xf32, #tpu.memory_space<vmem>>, %arg6: memref<72x256xf32, #tpu.memory_space<vmem>>, %arg7: memref<4x256xf32, #tpu.memory_space<vmem>>) attributes {dimension_semantics = [#tpu.dimension_semantics<parallel>], iteration_bounds = array<i64: 2>, scalar_prefetch = 0 : i64, scratch_operands = 0 : i64, tpu.core_type = #tpu.core_type<tc>, window_params = [{transform_indices = @transform_0, window_bounds = array<i64: 4, 256>}, {pipeline_mode = #tpu.pipeline_mode<synchronous>, transform_indices = @transform_1, window_bounds = array<i64: 8, 4>}, {pipeline_mode = #tpu.pipeline_mode<synchronous>, transform_indices = @transform_2, window_bounds = array<i64: 8, 1>}, {pipeline_mode = #tpu.pipeline_mode<synchronous>, transform_indices = @transform_3, window_bounds = array<i64: 4, 72>}, {pipeline_mode = #tpu.pipeline_mode<synchronous>, transform_indices = @transform_4, window_bounds = array<i64: 4, 1>}, {pipeline_mode = #tpu.pipeline_mode<synchronous>, transform_indices = @transform_5, window_bounds = array<i64: 72, 256>}, {transform_indices = @transform_6, window_bounds = array<i64: 4, 256>}]} {
    %c0 = arith.constant 0 : index
    %c0_0 = arith.constant 0 : index
    %0 = vector.load %arg1[%c0, %c0_0] : memref<4x256xf32, #tpu.memory_space<vmem>>, vector<4x256xf32>
    %c0_1 = arith.constant 0 : index
    %c0_2 = arith.constant 0 : index
    %1 = vector.load %arg2[%c0_1, %c0_2] : memref<8x4xf32, #tpu.memory_space<vmem>>, vector<8x4xf32>
    %cst = arith.constant dense<0.000000e+00> : vector<8x256xf32>
    %2 = tpu.matmul %1, %0, %cst {dimension_numbers = #tpu.dot_dimension_numbers<[1], [0], [0], [1], [0, 0, 1, 1], [], []>} : vector<8x4xf32>, vector<4x256xf32>, vector<8x256xf32> -> vector<8x256xf32>
    %c0_3 = arith.constant 0 : index
    %c0_4 = arith.constant 0 : index
    %3 = vector.load %arg3[%c0_3, %c0_4] : memref<8x1xf32, #tpu.memory_space<vmem>>, vector<8x1xf32>
    %4 = vector.broadcast %3 : vector<8x1xf32> to vector<8x256xf32>
    %5 = arith.addf %2, %4 : vector<8x256xf32>
    %cst_5 = arith.constant 0.000000e+00 : f32
    %6 = vector.broadcast %cst_5 : f32 to vector<8x256xf32>
    %7 = arith.cmpf ogt, %5, %6 : vector<8x256xf32>
    %cst_6 = arith.constant 0.00999999977 : f32
    %8 = vector.broadcast %cst_6 : f32 to vector<8x256xf32>
    %9 = arith.mulf %8, %5 : vector<8x256xf32>
    %10 = arith.select %7, %5, %9 : vector<8x256xi1>, vector<8x256xf32>
    %c17_i32 = arith.constant 17 : i32
    %11 = tpu.dynamic_rotate %10 by %c17_i32 dim 1 : vector<8x256xf32>, i32 -> vector<8x256xf32>
    %c16_i32 = arith.constant 16 : i32
    %12 = tpu.dynamic_rotate %10 by %c16_i32 dim 1 : vector<8x256xf32>, i32 -> vector<8x256xf32>
    %c15_i32 = arith.constant 15 : i32
    %13 = tpu.dynamic_rotate %10 by %c15_i32 dim 1 : vector<8x256xf32>, i32 -> vector<8x256xf32>
    %c1_i32 = arith.constant 1 : i32
    %14 = tpu.dynamic_rotate %10 by %c1_i32 dim 1 : vector<8x256xf32>, i32 -> vector<8x256xf32>
    %c255_i32 = arith.constant 255 : i32
    %15 = tpu.dynamic_rotate %10 by %c255_i32 dim 1 : vector<8x256xf32>, i32 -> vector<8x256xf32>
    %c241_i32 = arith.constant 241 : i32
    %16 = tpu.dynamic_rotate %10 by %c241_i32 dim 1 : vector<8x256xf32>, i32 -> vector<8x256xf32>
    %c240_i32 = arith.constant 240 : i32
    %17 = tpu.dynamic_rotate %10 by %c240_i32 dim 1 : vector<8x256xf32>, i32 -> vector<8x256xf32>
    %c239_i32 = arith.constant 239 : i32
    %18 = tpu.dynamic_rotate %10 by %c239_i32 dim 1 : vector<8x256xf32>, i32 -> vector<8x256xf32>
    %19 = tpu.concatenate %11, %12, %13, %14, %10, %15, %16, %17, %18 in 0 : vector<8x256xf32>, vector<8x256xf32>, vector<8x256xf32>, vector<8x256xf32>, vector<8x256xf32>, vector<8x256xf32>, vector<8x256xf32>, vector<8x256xf32>, vector<8x256xf32> -> vector<72x256xf32>
    %c0_7 = arith.constant 0 : index
    %c0_8 = arith.constant 0 : index
    %20 = vector.load %arg6[%c0_7, %c0_8] : memref<72x256xf32, #tpu.memory_space<vmem>>, vector<72x256xf32>
    %21 = arith.mulf %19, %20 : vector<72x256xf32>
    %c0_9 = arith.constant 0 : index
    %c0_10 = arith.constant 0 : index
    %22 = vector.load %arg4[%c0_9, %c0_10] : memref<4x72xf32, #tpu.memory_space<vmem>>, vector<4x72xf32>
    %cst_11 = arith.constant dense<0.000000e+00> : vector<4x256xf32>
    %23 = tpu.matmul %22, %21, %cst_11 {dimension_numbers = #tpu.dot_dimension_numbers<[1], [0], [0], [1], [0, 0, 1, 1], [], []>} : vector<4x72xf32>, vector<72x256xf32>, vector<4x256xf32> -> vector<4x256xf32>
    %c0_12 = arith.constant 0 : index
    %c0_13 = arith.constant 0 : index
    %24 = vector.load %arg5[%c0_12, %c0_13] : memref<4x1xf32, #tpu.memory_space<vmem>>, vector<4x1xf32>
    %25 = vector.broadcast %24 : vector<4x1xf32> to vector<4x256xf32>
    %26 = arith.addf %23, %25 : vector<4x256xf32>
    %cst_14 = arith.constant 0.000000e+00 : f32
    %27 = vector.broadcast %cst_14 : f32 to vector<4x256xf32>
    %28 = arith.cmpf ogt, %26, %27 : vector<4x256xf32>
    %cst_15 = arith.constant 0.00999999977 : f32
    %29 = vector.broadcast %cst_15 : f32 to vector<4x256xf32>
    %30 = arith.mulf %29, %26 : vector<4x256xf32>
    %31 = arith.select %28, %26, %30 : vector<4x256xi1>, vector<4x256xf32>
    %32 = arith.addf %31, %0 : vector<4x256xf32>
    %c0_16 = arith.constant 0 : index
    %c0_17 = arith.constant 0 : index
    %33 = vector.load %arg7[%c0_16, %c0_17] : memref<4x256xf32, #tpu.memory_space<vmem>>, vector<4x256xf32>
    tpu.vector_store %arg7[%c0_16, %c0_17], %32 {strides = array<i32>} : memref<4x256xf32, #tpu.memory_space<vmem>>, vector<4x256xf32>,
    return
  }
  func.func @transform_0(%arg0: i32) -> (i32, i32) {
    %c0_i32 = arith.constant 0 : i32
    %c0_i32_0 = arith.constant 0 : i32
    return %c0_i32, %arg0 : i32, i32
  }
  func.func @transform_1(%arg0: i32) -> (i32, i32) {
    %c0_i32 = arith.constant 0 : i32
    %c0_i32_0 = arith.constant 0 : i32
    %c0_i32_1 = arith.constant 0 : i32
    return %c0_i32, %c0_i32_0 : i32, i32
  }
  func.func @transform_2(%arg0: i32) -> (i32, i32) {
    %c0_i32 = arith.constant 0 : i32
    %c0_i32_0 = arith.constant 0 : i32
    %c0_i32_1 = arith.constant 0 : i32
    return %c0_i32, %c0_i32_0 : i32, i32
  }
  func.func @transform_3(%arg0: i32) -> (i32, i32) {
    %c0_i32 = arith.constant 0 : i32
    %c0_i32_0 = arith.constant 0 : i32
    %c0_i32_1 = arith.constant 0 : i32
    return %c0_i32, %c0_i32_0 : i32, i32
  }
  func.func @transform_4(%arg0: i32) -> (i32, i32) {
    %c0_i32 = arith.constant 0 : i32
    %c0_i32_0 = arith.constant 0 : i32
    %c0_i32_1 = arith.constant 0 : i32
    return %c0_i32, %c0_i32_0 : i32, i32
  }
  func.func @transform_5(%arg0: i32) -> (i32, i32) {
    %c0_i32 = arith.constant 0 : i32
    %c0_i32_0 = arith.constant 0 : i32
    %c0_i32_1 = arith.constant 0 : i32
    return %c0_i32, %c0_i32_0 : i32, i32
  }
  func.func @transform_6(%arg0: i32) -> (i32, i32) {
    %c0_i32 = arith.constant 0 : i32
    %c0_i32_0 = arith.constant 0 : i32
    return %c0_i32, %arg0 : i32, i32
  }
}

</mosaic_0001>

<llo_original>
// kernel: tpu_custom_call.1
$region0: #{tpu_custom_call.1}
  #allocation0 [shape = 'u32[]', space=smem, size = 0x4, offset = 0x4, fixed_abs, tag = 'smem constant byte address 0x4 - core index']
  #allocation1 [shape = 'u32[72,128]{1,0:T(1,128)}', space=vmem, size = 0x9000, scoped, tag = 'internal scratch']
  %s0 = inlined_call_operand.vmem [shape: f32[4,512], index: 0, kind: input, shape index: {}]
  %s1 = inlined_call_operand.vmem [shape: f32[8,4], index: 1, kind: input, shape index: {}]
  %s2 = inlined_call_operand.vmem [shape: f32[8,1], index: 2, kind: input, shape index: {}]
  %s3 = inlined_call_operand.vmem [shape: f32[4,72], index: 3, kind: input, shape index: {}]
  %s4 = inlined_call_operand.vmem [shape: f32[4,1], index: 4, kind: input, shape index: {}]
  %s5 = inlined_call_operand.hbm [shape: f32[72,256], index: 5, kind: input, shape index: {}]
  %s6 = inlined_call_operand.hbm [shape: f32[4,512], index: 6, kind: output, shape index: {}]
  %s7 = sld [smem:[#allocation0]]
  $region61: #{tpu_custom_call.1} parent=0
    _
  %s9 = ssub.s32 1, %s7
  %s10 = scalar_select 0, %s9, %s7
  $region1: #{tpu_custom_call.1} parent=0
    #allocation2 [shape = 'u8[73728]{0}', space=vmem, size = 0x12000, scoped, tag = 'input window, operand 5, single buffered']
    #allocation3 [shape = 's32[2]{0}', space=sflag, size = 0x8, scoped, tag = 'scoped memory for tpu_custom_call.1']
    #allocation4 [shape = 's32[2]{0}', space=sflag, size = 0x8, scoped, tag = 'scoped memory for tpu_custom_call.1']
    #allocation5 [shape = 'u8[8192]{0}', space=vmem, size = 0x2000, scoped, tag = 'output window, operand 0']
    %11 = vsyncpa [#allocation3], 0
    %12 = vsyncpa [#allocation4], 0
    %s13 = scalar_lea.sflag [#allocation4], 1
    %14 = vsyncpa %s13, 0
    loop: start=0, step=1, limit=4
    $region2: #{tpu_custom_call.1} parent=1 // loop_pre_header
      _
    $region3: #{tpu_custom_call.1} parent=1 // loop_header
      %s16 = sphi 0, %s20
      %p17 = scmp.ge.s32.totalorder %s16, 4
      %s26 = sphi 0, %s28
      %s29 = sphi 0, %s26
      %s30 = sphi 0, %s29
      %s46 = sphi 0, %s30
      %s50 = sphi 0, %s50
      %s52 = sphi 0, %s50
      %s53 = sphi 0, %s52
      %s67 = sphi 0, %s53
      %s71 = sphi 0, %s71
      %s73 = sphi 0, %s71
      %s74 = sphi 0, %s73
      %s88 = sphi 0, %s74
      %s92 = sphi 0, %s92
      %s94 = sphi 0, %s92
      %s95 = sphi 0, %s94
      %s109 = sphi 0, %s95
      %s113 = sphi 0, %s113
      %s115 = sphi 0, %s113
      %s116 = sphi 0, %s115
      %s130 = sphi 0, %s116
      %s134 = sphi 0, %s134
      %s136 = sphi 0, %s134
      %s137 = sphi 0, %s136
      %s151 = sphi 0, %s137
      %s157 = sphi 0, %s159
      %s160 = sphi 0, %s157
      %s161 = sphi 0, %s160
      %s177 = sphi 0, %s161
    $region4: #{tpu_custom_call.1} parent=1 // loop_header_branch
      %19 = sbr.rel (%p17) target = $region8
    $region5: #{tpu_custom_call.1} parent=1 // loop_body
      %s21 = ssub.s32 %s16, 1
      %s22 = ssub.s32 %s16, 2
      %s23 = sadd.s32 %s16, 1
      %s24 = ssub.s32 %s16, %s23
      %p25 = scmp.eq.s32.totalorder %s24, 0
      %s27 = sadd.s32 %s26, 1
      %s28 = scalar_select %p25, %s26, %s27
      %p31 = pneg %p25
      %p32 = scmp.eq.s32.totalorder %s16, 1
      %p33 = por %p31, %p32
      %p34 = scmp.ne.s32.totalorder %s26, %s29
      %p35 = scmp.eq.s32.totalorder %s16, 0
      %p36 = por %p34, %p35
      %p37 = scmp.ne.s32.totalorder %s26, %s29
      %p38 = scmp.eq.s32.totalorder %s21, 1
      %p39 = por %p37, %p38
      %p40 = scmp.ne.s32.totalorder %s29, %s30
      %p41 = scmp.eq.s32.totalorder %s21, 0
      %p42 = por %p40, %p41
      %p43 = scmp.ne.s32.totalorder %s29, %s30
      %p44 = scmp.eq.s32.totalorder %s22, 1
      %p45 = por %p43, %p44
      %p47 = scmp.ne.s32.totalorder %s30, %s46
      %p48 = scmp.eq.s32.totalorder %s22, 0
      %p49 = por %p47, %p48
      %s51 = sadd.s32 %s50, 1
      %p54 = scmp.eq.s32.totalorder %s16, 1
      %p55 = scmp.ne.s32.totalorder %s50, %s52
      %p56 = scmp.eq.s32.totalorder %s16, 0
      %p57 = por %p55, %p56
      %p58 = scmp.ne.s32.totalorder %s50, %s52
      %p59 = scmp.eq.s32.totalorder %s21, 1
      %p60 = por %p58, %p59
      %p61 = scmp.ne.s32.totalorder %s52, %s53
      %p62 = scmp.eq.s32.totalorder %s21, 0
      %p63 = por %p61, %p62
      %p64 = scmp.ne.s32.totalorder %s52, %s53
      %p65 = scmp.eq.s32.totalorder %s22, 1
      %p66 = por %p64, %p65
      %p68 = scmp.ne.s32.totalorder %s53, %s67
      %p69 = scmp.eq.s32.totalorder %s22, 0
      %p70 = por %p68, %p69
      %s72 = sadd.s32 %s71, 1
      %p75 = scmp.eq.s32.totalorder %s16, 1
      %p76 = scmp.ne.s32.totalorder %s71, %s73
      %p77 = scmp.eq.s32.totalorder %s16, 0
      %p78 = por %p76, %p77
      %p79 = scmp.ne.s32.totalorder %s71, %s73
      %p80 = scmp.eq.s32.totalorder %s21, 1
      %p81 = por %p79, %p80
      %p82 = scmp.ne.s32.totalorder %s73, %s74
      %p83 = scmp.eq.s32.totalorder %s21, 0
      %p84 = por %p82, %p83
      %p85 = scmp.ne.s32.totalorder %s73, %s74
      %p86 = scmp.eq.s32.totalorder %s22, 1
      %p87 = por %p85, %p86
      %p89 = scmp.ne.s32.totalorder %s74, %s88
      %p90 = scmp.eq.s32.totalorder %s22, 0
      %p91 = por %p89, %p90
      %s93 = sadd.s32 %s92, 1
      %p96 = scmp.eq.s32.totalorder %s16, 1
      %p97 = scmp.ne.s32.totalorder %s92, %s94
      %p98 = scmp.eq.s32.totalorder %s16, 0
      %p99 = por %p97, %p98
      %p100 = scmp.ne.s32.totalorder %s92, %s94
      %p101 = scmp.eq.s32.totalorder %s21, 1
      %p102 = por %p100, %p101
      %p103 = scmp.ne.s32.totalorder %s94, %s95
      %p104 = scmp.eq.s32.totalorder %s21, 0
      %p105 = por %p103, %p104
      %p106 = scmp.ne.s32.totalorder %s94, %s95
      %p107 = scmp.eq.s32.totalorder %s22, 1
      %p108 = por %p106, %p107
      %p110 = scmp.ne.s32.totalorder %s95, %s109
      %p111 = scmp.eq.s32.totalorder %s22, 0
      %p112 = por %p110, %p111
      %s114 = sadd.s32 %s113, 1
      %p117 = scmp.eq.s32.totalorder %s16, 1
      %p118 = scmp.ne.s32.totalorder %s113, %s115
      %p119 = scmp.eq.s32.totalorder %s16, 0
      %p120 = por %p118, %p119
      %p121 = scmp.ne.s32.totalorder %s113, %s115
      %p122 = scmp.eq.s32.totalorder %s21, 1
      %p123 = por %p121, %p122
      %p124 = scmp.ne.s32.totalorder %s115, %s116
      %p125 = scmp.eq.s32.totalorder %s21, 0
      %p126 = por %p124, %p125
      %p127 = scmp.ne.s32.totalorder %s115, %s116
      %p128 = scmp.eq.s32.totalorder %s22, 1
      %p129 = por %p127, %p128
      %p131 = scmp.ne.s32.totalorder %s116, %s130
      %p132 = scmp.eq.s32.totalorder %s22, 0
      %p133 = por %p131, %p132
      %s135 = sadd.s32 %s134, 1
      %p138 = scmp.eq.s32.totalorder %s16, 1
      %p139 = scmp.ne.s32.totalorder %s134, %s136
      %p140 = scmp.eq.s32.totalorder %s16, 0
      %p141 = por %p139, %p140
      %p142 = scmp.ne.s32.totalorder %s134, %s136
      %p143 = scmp.eq.s32.totalorder %s21, 1
      %p144 = por %p142, %p143
      %p145 = scmp.ne.s32.totalorder %s136, %s137
      %p146 = scmp.eq.s32.totalorder %s21, 0
      %p147 = por %p145, %p146
      %p148 = scmp.ne.s32.totalorder %s136, %s137
      %p149 = scmp.eq.s32.totalorder %s22, 1
      %p150 = por %p148, %p149
      %p152 = scmp.ne.s32.totalorder %s137, %s151
      %p153 = scmp.eq.s32.totalorder %s22, 0
      %p154 = por %p152, %p153
      %s155 = ssub.s32 %s16, %s23
      %p156 = scmp.eq.s32.totalorder %s155, 0
      %s158 = sadd.s32 %s157, 1
      %s159 = scalar_select %p156, %s157, %s158
      %p162 = pneg %p156
      %p163 = scmp.eq.s32.totalorder %s16, 1
      %p164 = por %p162, %p163
      %p165 = scmp.ne.s32.totalorder %s157, %s160
      %p166 = scmp.eq.s32.totalorder %s16, 0
      %p167 = por %p165, %p166
      %p168 = scmp.ne.s32.totalorder %s157, %s160
      %p169 = scmp.eq.s32.totalorder %s21, 1
      %p170 = por %p168, %p169
      %p171 = scmp.ne.s32.totalorder %s160, %s161
      %p172 = scmp.eq.s32.totalorder %s21, 0
      %p173 = por %p171, %p172
      %p174 = scmp.ne.s32.totalorder %s160, %s161
      %p175 = scmp.eq.s32.totalorder %s22, 1
      %p176 = por %p174, %p175
      %p178 = scmp.ne.s32.totalorder %s161, %s177
      %p179 = scmp.eq.s32.totalorder %s22, 0
      %p180 = por %p178, %p179
      %p181 = scmp.le.s32.totalorder 1, %s16
      %p182 = scmp.lt.s32.totalorder %s16, 3
      %p183 = pnand %p181, %p182
      %p184 = pneg %p183
      // Predicated region
      $region9: #{tpu_custom_call.1} parent=5 // pred_check
        _
      $region10: #{tpu_custom_call.1} parent=5 // pred_check_branch
        %186 = sbr.rel (%p183) target = $region12
      $region11: #{tpu_custom_call.1} parent=5 // pred_region
        %s187 = ssub.s32 %s16, 1
        // Predicated region
        $region13: #{tpu_custom_call.1} parent=11 // pred_check
          %p188 = pneg %p63
        $region14: #{tpu_custom_call.1} parent=11 // pred_check_branch
          %190 = sbr.rel (%p188) target = $region16
        $region15: #{tpu_custom_call.1} parent=11 // pred_region
          _
        $region16: #{tpu_custom_call.1} parent=11 // pred_fallthru
          _
        // Predicated region
        $region17: #{tpu_custom_call.1} parent=11 // pred_check
          %p191 = pneg %p84
        $region18: #{tpu_custom_call.1} parent=11 // pred_check_branch
          %193 = sbr.rel (%p191) target = $region20
        $region19: #{tpu_custom_call.1} parent=11 // pred_region
          _
        $region20: #{tpu_custom_call.1} parent=11 // pred_fallthru
          _
        // Predicated region
        $region21: #{tpu_custom_call.1} parent=11 // pred_check
          %p194 = pneg %p105
        $region22: #{tpu_custom_call.1} parent=11 // pred_check_branch
          %196 = sbr.rel (%p194) target = $region24
        $region23: #{tpu_custom_call.1} parent=11 // pred_region
          _
        $region24: #{tpu_custom_call.1} parent=11 // pred_fallthru
          _
        // Predicated region
        $region25: #{tpu_custom_call.1} parent=11 // pred_check
          %p197 = pneg %p126
        $region26: #{tpu_custom_call.1} parent=11 // pred_check_branch
          %199 = sbr.rel (%p197) target = $region28
        $region27: #{tpu_custom_call.1} parent=11 // pred_region
          _
        $region28: #{tpu_custom_call.1} parent=11 // pred_fallthru
          _
        // Predicated region
        $region29: #{tpu_custom_call.1} parent=11 // pred_check
          %p200 = pneg %p147
        $region30: #{tpu_custom_call.1} parent=11 // pred_check_branch
          %202 = sbr.rel (%p200) target = $region32
        $region31: #{tpu_custom_call.1} parent=11 // pred_region
          %204 = vsyncadd [#allocation3], 0
          %s205 = sshll.u32 %s5, 4
          %s206 = int_to_ptr.hbm [resolvable:$true] %s205
          %s207 = sshll.u32 [#allocation2], 4
          %s208 = int_to_ptr.vmem [resolvable:$true] %s207
          %213 = dma.hbm_to_vmem [thread:$0]  %s206, 2304, %s208, [#allocation3], 256, 256, 16
        $region32: #{tpu_custom_call.1} parent=11 // pred_fallthru
          _
      $region12: #{tpu_custom_call.1} parent=5 // pred_fallthru
        _
      %p214 = scmp.lt.s32.totalorder %s16, 2
      // Predicated region
      $region33: #{tpu_custom_call.1} parent=5 // pred_check
        %p215 = pneg %p214
      $region34: #{tpu_custom_call.1} parent=5 // pred_check_branch
        %217 = sbr.rel (%p215) target = $region36
      $region35: #{tpu_custom_call.1} parent=5 // pred_region
        // Predicated region
        $region37: #{tpu_custom_call.1} parent=35 // pred_check
          %p218 = pneg %p36
        $region38: #{tpu_custom_call.1} parent=35 // pred_check_branch
          %220 = sbr.rel (%p218) target = $region40
        $region39: #{tpu_custom_call.1} parent=35 // pred_region
          %s221 = smul.u32 2, %s16
          %p222 = scmp.lt.s32.totalorder %s221, 3
          %s223 = scalar_select %p222, %s221, 3
          %s224 = smul.addr %s223, 4
          %s225 = scalar_lea.vmem %s0, %s224
          %s226 = smul.u32 2, %s16
        $region40: #{tpu_custom_call.1} parent=35 // pred_fallthru
          _
      $region36: #{tpu_custom_call.1} parent=5 // pred_fallthru
        _
      %p227 = scmp.le.s32.totalorder 1, %s16
      %p228 = scmp.lt.s32.totalorder %s16, 3
      %p229 = pnand %p227, %p228
      %p230 = pneg %p229
      // Predicated region
      $region41: #{tpu_custom_call.1} parent=5 // pred_check
        _
      $region42: #{tpu_custom_call.1} parent=5 // pred_check_branch
        %232 = sbr.rel (%p229) target = $region44
      $region43: #{tpu_custom_call.1} parent=5 // pred_region
        %s233 = ssub.s32 %s16, 1
        // Predicated region
        $region45: #{tpu_custom_call.1} parent=43 // pred_check
          %p234 = pneg %p147
        $region46: #{tpu_custom_call.1} parent=43 // pred_check_branch
          %236 = sbr.rel (%p234) target = $region48
        $region47: #{tpu_custom_call.1} parent=43 // pred_region
          %238 = dma.done [#allocation3], 2304
        $region48: #{tpu_custom_call.1} parent=43 // pred_fallthru
          _
        %s239 = smul.u32 2, %s21
        %p240 = scmp.lt.s32.totalorder %s239, 3
        %s241 = scalar_select %p240, %s239, 3
        %s242 = smul.addr %s241, 4
        %s243 = scalar_lea.vmem %s0, %s242
        %p244 = pneg %p42
        %p245 = pneg %p39
        %p246 = pneg %p63
        %p247 = pneg %p60
        %p248 = pneg %p84
        %p249 = pneg %p81
        %p250 = pneg %p105
        %p251 = pneg %p102
        %p252 = pneg %p126
        %p253 = pneg %p123
        %p254 = pneg %p147
        %p255 = pneg %p144
        %p256 = pneg %p173
        %p257 = pneg %p170
        %s258 = sand.u32 %s160, 1
        %s259 = scalar_lea.sflag [#allocation4], %s258
        %s260 = sand.u32 %s160, 1
        %s261 = smul.addr %s260, 8
        %s262 = scalar_lea.vmem [#allocation5], %s261
        %s263 = smul.u32 2, %s21
        %p264 = scmp.lt.s32.totalorder %s263, 3
        %s265 = scalar_select %p264, %s263, 3
        %s266 = smul.addr %s265, 4
        %s267 = scalar_lea.vmem %s0, %s266
        %s268 = smul.u32 2, %s21
        %s269 = smul.u32 2, %s21
        %v270 = vld [vmem:[%s267] sm:$0xff]
        %v271 = vld [vmem:[%s1] sm:$0xff]
        %v272 = vld [vmem:[%s2] sm:$0xff]
        %274 = vset.pattern.permute.xlu0 0
        %275 = vperm.xlu0 %274, %v272
        %v276 = vpop.permute.xlu0 %275
        %279 = vst [vmem:[#allocation1] ss:$2 sm:$0xff] %v270
        %v280 = vld.sshfl [vmem:[#allocation1] sm:$0xff pattern:$0x75316420]
        %v281 = vld.sshfl [vmem:[#allocation1 + $0x8] sm:$0xff pattern:$0x75316420]
        %vm282 = vcmask 31744
        %v284 = vsel %vm282, %v271, 0
        %vm286 = vcmask 1043456
        %v287 = vsel %vm286, %v280, 0
        %v289 = vsel %vm286, %v281, 0
        %291 = vmatpush.msra.mxu0 0.0
        %292 = vmatpush.msra.mxu0 0.0
        %293 = vmatpush.msra.mxu0 0.0
        %294 = vmatpush.msra.mxu0 0.0
        %295 = vmatpush.msra.mxu0 0.0
        %296 = vmatpush.msra.mxu0 0.0
        %297 = vmatpush.msra.mxu0 0.0
        %298 = vmatpush.msra.mxu0 0.0
        %299 = vmatpush.msra.mxu0 0.0
        %300 = vmatpush.msra.mxu0 0.0
        %301 = vmatpush.msra.mxu0 0.0
        %302 = vmatpush.msra.mxu0 0.0
        %303 = vmatpush.msra.mxu0 0.0
        %304 = vmatpush.msra.mxu0 0.0
        %305 = vmatpush.msra.mxu0 0.0
        %306 = vmatpush.msra.mxu0 %v287
        %307 = vmatmul.f32.gmra.mxu0 %v284
        %v308 = vpop.f32.mrf.mxu0
        %v309 = vadd.f32 %v276, %v308
        %310 = vdwg.mxu0
        %311 = vmatpush.msra.mxu0 0.0
        %312 = vmatpush.msra.mxu0 0.0
        %313 = vmatpush.msra.mxu0 0.0
        %314 = vmatpush.msra.mxu0 0.0
        %315 = vmatpush.msra.mxu0 0.0
        %316 = vmatpush.msra.mxu0 0.0
        %317 = vmatpush.msra.mxu0 0.0
        %318 = vmatpush.msra.mxu0 0.0
        %319 = vmatpush.msra.mxu0 0.0
        %320 = vmatpush.msra.mxu0 0.0
        %321 = vmatpush.msra.mxu0 0.0
        %322 = vmatpush.msra.mxu0 0.0
        %323 = vmatpush.msra.mxu0 0.0
        %324 = vmatpush.msra.mxu0 0.0
        %325 = vmatpush.msra.mxu0 0.0
        %326 = vmatpush.msra.mxu0 %v289
        %327 = vmatmul.f32.gmra.mxu0 %v284
        %v328 = vpop.f32.mrf.mxu0
        %v329 = vadd.f32 %v276, %v328
        %330 = vdwg.mxu0
        %vm331 = vcmp.gt.f32.partialorder %v309, 0.0
        %vm332 = vcmp.gt.f32.partialorder %v329, 0.0
        %v333 = vmul.f32 %v309, 0.01
        %v334 = vmul.f32 %v329, 0.01
        %v335 = vsel %vm331, %v309, %v333
        %v336 = vsel %vm332, %v329, %v334
        %337 = vrot.lane.b32.xlu0 %v335, 17
        %v338 = vpop.permute.xlu0 %337
        %339 = vrot.lane.b32.xlu0 %v336, 17
        %v340 = vpop.permute.xlu0 %339
        %v341 = vlaneseq
        %v342 = vand.u32 %v341, 127
        %vm343 = vcmp.lt.s32.totalorder %v342, 17
        %v344 = vsel %vm343, %v338, %v340
        %v345 = vsel %vm343, %v340, %v338
        %346 = vrot.lane.b32.xlu0 %v335, 16
        %v347 = vpop.permute.xlu0 %346
        %348 = vrot.lane.b32.xlu0 %v336, 16
        %v349 = vpop.permute.xlu0 %348
        %vm350 = vcmp.lt.s32.totalorder %v342, 16
        %v351 = vsel %vm350, %v347, %v349
        %v352 = vsel %vm350, %v349, %v347
        %353 = vrot.lane.b32.xlu0 %v335, 15
        %v354 = vpop.permute.xlu0 %353
        %355 = vrot.lane.b32.xlu0 %v336, 15
        %v356 = vpop.permute.xlu0 %355
        %vm357 = vcmp.lt.s32.totalorder %v342, 15
        %v358 = vsel %vm357, %v354, %v356
        %v359 = vsel %vm357, %v356, %v354
        %360 = vrot.lane.b32.xlu0 %v335, 1
        %v361 = vpop.permute.xlu0 %360
        %362 = vrot.lane.b32.xlu0 %v336, 1
        %v363 = vpop.permute.xlu0 %362
        %vm364 = vcmp.lt.s32.totalorder %v342, 1
        %v365 = vsel %vm364, %v361, %v363
        %v366 = vsel %vm364, %v363, %v361
        %367 = vrot.lane.b32.xlu0 %v335, 127
        %v368 = vpop.permute.xlu0 %367
        %369 = vrot.lane.b32.xlu0 %v336, 127
        %v370 = vpop.permute.xlu0 %369
        %vm371 = vcmp.lt.s32.totalorder %v342, 127
        %v372 = vsel %vm371, %v368, %v370
        %v373 = vsel %vm371, %v370, %v368
        %374 = vrot.lane.b32.xlu0 %v335, 113
        %v375 = vpop.permute.xlu0 %374
        %376 = vrot.lane.b32.xlu0 %v336, 113
        %v377 = vpop.permute.xlu0 %376
        %vm378 = vcmp.lt.s32.totalorder %v342, 113
        %v379 = vsel %vm378, %v375, %v377
        %v380 = vsel %vm378, %v377, %v375
        %381 = vrot.lane.b32.xlu0 %v335, 112
        %v382 = vpop.permute.xlu0 %381
        %383 = vrot.lane.b32.xlu0 %v336, 112
        %v384 = vpop.permute.xlu0 %383
        %vm385 = vcmp.lt.s32.totalorder %v342, 112
        %v386 = vsel %vm385, %v382, %v384
        %v387 = vsel %vm385, %v384, %v382
        %388 = vrot.lane.b32.xlu0 %v335, 111
        %v389 = vpop.permute.xlu0 %388
        %390 = vrot.lane.b32.xlu0 %v336, 111
        %v391 = vpop.permute.xlu0 %390
        %vm392 = vcmp.lt.s32.totalorder %v342, 111
        %v393 = vsel %vm392, %v389, %v391
        %v394 = vsel %vm392, %v391, %v389
        %v395 = vld [vmem:[#allocation2] sm:$0xff]
        %v396 = vld [vmem:[#allocation2 + $0x8] sm:$0xff]
        %v397 = vld [vmem:[#allocation2 + $0x10] sm:$0xff]
        %v398 = vld [vmem:[#allocation2 + $0x18] sm:$0xff]
        %v399 = vld [vmem:[#allocation2 + $0x20] sm:$0xff]
        %v400 = vld [vmem:[#allocation2 + $0x28] sm:$0xff]
        %v401 = vld [vmem:[#allocation2 + $0x30] sm:$0xff]
        %v402 = vld [vmem:[#allocation2 + $0x38] sm:$0xff]
        %v403 = vld [vmem:[#allocation2 + $0x40] sm:$0xff]
        %v404 = vld [vmem:[#allocation2 + $0x48] sm:$0xff]
        %v405 = vld [vmem:[#allocation2 + $0x50] sm:$0xff]
        %v406 = vld [vmem:[#allocation2 + $0x58] sm:$0xff]
        %v407 = vld [vmem:[#allocation2 + $0x60] sm:$0xff]
        %v408 = vld [vmem:[#allocation2 + $0x68] sm:$0xff]
        %v409 = vld [vmem:[#allocation2 + $0x70] sm:$0xff]
        %v410 = vld [vmem:[#allocation2 + $0x78] sm:$0xff]
        %v411 = vld [vmem:[#allocation2 + $0x80] sm:$0xff]
        %v412 = vld [vmem:[#allocation2 + $0x88] sm:$0xff]
        %v413 = vmul.f32 %v345, %v395
        %v414 = vmul.f32 %v344, %v396
        %v415 = vmul.f32 %v352, %v397
        %v416 = vmul.f32 %v351, %v398
        %v417 = vmul.f32 %v359, %v399
        %v418 = vmul.f32 %v358, %v400
        %v419 = vmul.f32 %v366, %v401
        %v420 = vmul.f32 %v365, %v402
        %v421 = vmul.f32 %v335, %v403
        %v422 = vmul.f32 %v336, %v404
        %v423 = vmul.f32 %v372, %v405
        %v424 = vmul.f32 %v373, %v406
        %v425 = vmul.f32 %v379, %v407
        %v426 = vmul.f32 %v380, %v408
        %v427 = vmul.f32 %v386, %v409
        %v428 = vmul.f32 %v387, %v410
        %v429 = vmul.f32 %v393, %v411
        %v430 = vmul.f32 %v394, %v412
        %v431 = vld [vmem:[%s3] sm:$0xf]
        %v432 = vld [vmem:[%s4] sm:$0xf]
        %434 = vset.pattern.permute.xlu0 0
        %435 = vperm.xlu0 %434, %v432
        %v436 = vpop.permute.xlu0 %435
        %vm438 = vcmask 588800
        %v440 = vsel %vm438, %v431, 0
        %442 = vmatpush.msra.mxu0 0.0
        %443 = vmatpush.msra.mxu0 0.0
        %444 = vmatpush.msra.mxu0 0.0
        %445 = vmatpush.msra.mxu0 0.0
        %446 = vmatpush.msra.mxu0 0.0
        %447 = vmatpush.msra.mxu0 0.0
        %448 = vmatpush.msra.mxu0 0.0
        %449 = vmatpush.msra.mxu0 %v429
        %450 = vmatpush.msra.mxu0 %v427
        %451 = vmatpush.msra.mxu0 %v425
        %452 = vmatpush.msra.mxu0 %v423
        %453 = vmatpush.msra.mxu0 %v421
        %454 = vmatpush.msra.mxu0 %v419
        %455 = vmatpush.msra.mxu0 %v417
        %456 = vmatpush.msra.mxu0 %v415
        %457 = vmatpush.msra.mxu0 %v413
        %458 = vmatmul.f32.gmra.mxu0 %v440
        %v459 = vpop.f32.mrf.mxu0
        %v460 = vadd.f32 %v436, %v459
        %461 = vdwg.mxu0
        %462 = vmatpush.msra.mxu0 0.0
        %463 = vmatpush.msra.mxu0 0.0
        %464 = vmatpush.msra.mxu0 0.0
        %465 = vmatpush.msra.mxu0 0.0
        %466 = vmatpush.msra.mxu0 0.0
        %467 = vmatpush.msra.mxu0 0.0
        %468 = vmatpush.msra.mxu0 0.0
        %469 = vmatpush.msra.mxu0 %v430
        %470 = vmatpush.msra.mxu0 %v428
        %471 = vmatpush.msra.mxu0 %v426
        %472 = vmatpush.msra.mxu0 %v424
        %473 = vmatpush.msra.mxu0 %v422
        %474 = vmatpush.msra.mxu0 %v420
        %475 = vmatpush.msra.mxu0 %v418
        %476 = vmatpush.msra.mxu0 %v416
        %477 = vmatpush.msra.mxu0 %v414
        %478 = vmatmul.f32.gmra.mxu0 %v440
        %v479 = vpop.f32.mrf.mxu0
        %v480 = vadd.f32 %v436, %v479
        %481 = vdwg.mxu0
        %vm482 = vcmp.gt.f32.partialorder %v460, 0.0
        %vm483 = vcmp.gt.f32.partialorder %v480, 0.0
        %v484 = vmul.f32 %v460, 0.01
        %v485 = vmul.f32 %v480, 0.01
        %v486 = vsel %vm482, %v460, %v484
        %v487 = vsel %vm483, %v480, %v485
        %488 = vst [vmem:[#allocation1] ss:$2 sm:$0xff] %v270
        %v489 = vld.sshfl [vmem:[#allocation1] sm:$0xff pattern:$0x75316420]
        %v490 = vld.sshfl [vmem:[#allocation1 + $0x8] sm:$0xff pattern:$0x75316420]
        %v493 = vadd.f32 %v486, %v489
        %v494 = vadd.f32 %v487, %v490
        %v497 = vrot.slane %v494, 4
        %v498 = vsel %vm286, %v493, %v497
        %500 = vst [vmem:[%s262] sm:$0xff] %v498
        %s501 = sand.u32 %s160, 1
        %s502 = scalar_lea.sflag [#allocation4], %s501
        %s503 = sand.u32 %s160, 1
        %s504 = smul.addr %s503, 8
        %s505 = scalar_lea.vmem [#allocation5], %s504
        // Predicated region
        $region49: #{tpu_custom_call.1} parent=43 // pred_check
          %p506 = pneg %p170
        $region50: #{tpu_custom_call.1} parent=43 // pred_check_branch
          %508 = sbr.rel (%p506) target = $region52
        $region51: #{tpu_custom_call.1} parent=43 // pred_region
          %s509 = smul.u32 2, %s21
          %511 = vsyncadd %s502, 0
          %s512 = smul.addr %s509, 4
          %s513 = scalar_lea.hbm %s6, %s512
          %s515 = sshll.u32 %s505, 4
          %s516 = int_to_ptr.vmem [resolvable:$true] %s515
          %s517 = sshll.u32 %s513, 4
          %s518 = int_to_ptr.hbm [resolvable:$true] %s517
          %520 = dma.vmem_to_hbm [thread:$0]  %s516, 128, %s518, %s502
        $region52: #{tpu_custom_call.1} parent=43 // pred_fallthru
          _
      $region44: #{tpu_custom_call.1} parent=5 // pred_fallthru
        _
      %p521 = scmp.le.s32.totalorder 2, %s16
      // Predicated region
      $region53: #{tpu_custom_call.1} parent=5 // pred_check
        %p522 = pneg %p521
      $region54: #{tpu_custom_call.1} parent=5 // pred_check_branch
        %524 = sbr.rel (%p522) target = $region56
      $region55: #{tpu_custom_call.1} parent=5 // pred_region
        %s525 = ssub.s32 %s16, 2
        // Predicated region
        $region57: #{tpu_custom_call.1} parent=55 // pred_check
          %p526 = pneg %p176
        $region58: #{tpu_custom_call.1} parent=55 // pred_check_branch
          %528 = sbr.rel (%p526) target = $region60
        $region59: #{tpu_custom_call.1} parent=55 // pred_region
          %s529 = sand.u32 %s161, 1
          %s530 = scalar_lea.sflag [#allocation4], %s529
          %s531 = sand.u32 %s161, 1
          %s532 = smul.addr %s531, 8
          %s533 = scalar_lea.vmem [#allocation5], %s532
          %535 = dma.done %s530, 128
        $region60: #{tpu_custom_call.1} parent=55 // pred_fallthru
          _
      $region56: #{tpu_custom_call.1} parent=5 // pred_fallthru
        _
    $region6: #{tpu_custom_call.1} parent=1 // loop_footer
      %s20 = sadd.s32 1, %s16
    $region7: #{tpu_custom_call.1} parent=1 // loop_footer_branch
      %15 = sbr.rel target = $region3
    $region8: #{tpu_custom_call.1} parent=1 // loop_exit
      _
    %536 = vsyncpa [#allocation3], 1
    %s537 = scalar_lea.sflag [#allocation3], 1
    %538 = vsyncpa %s537, 1
    %539 = vsyncpa [#allocation4], 1
    %s540 = scalar_lea.sflag [#allocation4], 1
    %541 = vsyncpa %s540, 1

</llo_original>
